<compile_context>
chip_gen: v7x
topology: tpu7x:2x2x1
jax: 0.10.0
libtpu: 0.0.40
codegen_flags: <defaults>
</compile_context>

<pallas_src>
import jax
import jax.numpy as jnp
from jax.experimental import pallas as pl
from jax.experimental.pallas import tpu as pltpu


def _round_up(x, m):
    return (x + m - 1) // m * m


# --------------------------------------------------------------------------
# Pallas kernel: one (tm x tn) output tile of the complex matmul.
#   pr_ref, pi_ref : [tm, K]      compute dtype (bf16) im2col patches
#   w_ref          : [K, 2*tn]    compute dtype, [Wr_j | Wi_j] concatenated
#   bd_ref         : [1, tn]      f32, (b_r - b_i) slice for this Cout tile
#   out_r_ref/out_i_ref : [tm, tn] f32
# --------------------------------------------------------------------------
def cplx_mm_kernel(pr_ref, pi_ref, w_ref, bd_ref, out_r_ref, out_i_ref):
    tn = out_r_ref.shape[-1]
    pr = pr_ref[...]
    pi = pi_ref[...]
    w = w_ref[...]

    # Two MXU pushes (vs. Gauss' three) against the concatenated weight.
    a = jnp.dot(pr, w, preferred_element_type=jnp.float32)   # [tm, 2*tn] = [pr@Wr | pr@Wi]
    b = jnp.dot(pi, w, preferred_element_type=jnp.float32)   # [tm, 2*tn] = [pi@Wr | pi@Wi]

    bd = bd_ref[...]                                          # [1, tn] f32, (b_r - b_i)

    # Module semantics: real = x_r*W_r - x_i*W_i + (b_r - b_i); imag = x_r*W_i + x_i*W_r
    out_r_ref[...] = a[:, :tn] - b[:, tn:] + bd
    out_i_ref[...] = a[:, tn:] + b[:, :tn]


def _im2col_nchw(x, kh, kw, stride, padding):
    """x: [N, C, H, W] -> patches [N*Hout*Wout, C*kh*kw] (ordering C, kh, kw)."""
    n, c, h, w = x.shape
    xp = jnp.pad(x, ((0, 0), (0, 0), (padding, padding), (padding, padding)))
    h_out = (h + 2 * padding - kh) // stride + 1
    w_out = (w + 2 * padding - kw) // stride + 1
    slabs = []
    for i in range(kh):
        for j in range(kw):
            slabs.append(
                xp[:, :, i:i + (h_out - 1) * stride + 1:stride,
                         j:j + (w_out - 1) * stride + 1:stride]
            )  # [N, C, Hout, Wout]
    p = jnp.stack(slabs, axis=2)                       # [N, C, kh*kw, Hout, Wout]
    p = p.reshape(n, c * kh * kw, h_out * w_out)       # [N, K, Hout*Wout]
    p = jnp.transpose(p, (0, 2, 1)).reshape(n * h_out * w_out, c * kh * kw)
    return p, h_out, w_out


def complex_conv2d(x_real, x_imag, w_real, w_imag, b_real, b_imag,
                   stride=1, padding=1,
                   compute_dtype=jnp.bfloat16, tm=256, tn=128):
    """Complex conv2d matching complextorch _Conv.forward semantics.

    x_real/x_imag: [N, Cin, H, W] float32
    w_real/w_imag: [Cout, Cin, kh, kw] float32
    b_real/b_imag: [Cout] float32
    returns complex64 [N, Cout, Hout, Wout]
    """
    # TODO(synk): groups > 1, dilation != 1 and padding_mode != "zeros" are not implemented.
    n, cin, h, w = x_real.shape
    cout, _, kh, kw = w_real.shape

    pr, h_out, w_out = _im2col_nchw(x_real, kh, kw, stride, padding)
    pi, _, _ = _im2col_nchw(x_imag, kh, kw, stride, padding)
    m, k = pr.shape

    # ---- tile / pad sizes -------------------------------------------------
    tm = min(tm, _round_up(m, 8))          # row tile (multiple of 8 sublanes)
    m_pad = _round_up(m, tm)
    k_pad = _round_up(k, 16)               # bf16 sublane packing for the weight
    cn = _round_up(cout, tn)               # lane-dense output width
    n_j = cn // tn
    gm = m_pad // tm

    # ---- operand prep (wrapper-side, once) --------------------------------
    pr = jnp.pad(pr, ((0, m_pad - m), (0, k_pad - k))).astype(compute_dtype)
    pi = jnp.pad(pi, ((0, m_pad - m), (0, k_pad - k))).astype(compute_dtype)

    wr = jnp.pad(w_real.reshape(cout, k).T, ((0, k_pad - k), (0, cn - cout)))  # [K, Cn]
    wi = jnp.pad(w_imag.reshape(cout, k).T, ((0, k_pad - k), (0, cn - cout)))
    wr_t = wr.reshape(k_pad, n_j, tn).transpose(1, 0, 2)        # [n_j, K, tn]
    wi_t = wi.reshape(k_pad, n_j, tn).transpose(1, 0, 2)
    wcat = jnp.concatenate([wr_t, wi_t], axis=-1).astype(compute_dtype)  # [n_j, K, 2*tn]

    b_diff = jnp.pad(b_real - b_imag, (0, cn - cout)).astype(jnp.float32)
    b_diff = b_diff.reshape(n_j, 1, tn)

    # ---- cost hint ---------------------------------------------------------
    flops = 2 * 2 * m_pad * k_pad * (2 * tn) * n_j
    bytes_accessed = (2 * m_pad * k_pad * jnp.dtype(compute_dtype).itemsize
                      + gm * wcat.size * jnp.dtype(compute_dtype).itemsize
                      + 2 * m_pad * cn * 4 + b_diff.size * 4)

    out_r, out_i = pl.pallas_call(
        cplx_mm_kernel,
        out_shape=(jax.ShapeDtypeStruct((m_pad, cn), jnp.float32),
                   jax.ShapeDtypeStruct((m_pad, cn), jnp.float32)),
        grid_spec=pltpu.PrefetchScalarGridSpec(
            num_scalar_prefetch=0,
            grid=(gm, n_j),
            in_specs=[
                pl.BlockSpec((tm, k_pad), lambda i, j: (i, 0)),
                pl.BlockSpec((tm, k_pad), lambda i, j: (i, 0)),
                pl.BlockSpec((None, k_pad, 2 * tn), lambda i, j: (j, 0, 0)),
                pl.BlockSpec((None, 1, tn), lambda i, j: (j, 0, 0)),
            ],
            out_specs=[
                pl.BlockSpec((tm, tn), lambda i, j: (i, j)),
                pl.BlockSpec((tm, tn), lambda i, j: (i, j)),
            ],
        ),
        compiler_params=pltpu.CompilerParams(
            dimension_semantics=("parallel", "parallel"),
            vmem_limit_bytes=32 * 1024 * 1024,
        ),
        cost_estimate=pl.CostEstimate(flops=flops, transcendentals=0,
                                      bytes_accessed=bytes_accessed),
    )(pr, pi, wcat, b_diff)

    out_r = out_r[:m, :cout].reshape(n, h_out, w_out, cout).transpose(0, 3, 1, 2)
    out_i = out_i[:m, :cout].reshape(n, h_out, w_out, cout).transpose(0, 3, 1, 2)
    return jax.lax.complex(out_r, out_i)


def _reference(x_real, x_imag, w_real, w_imag, b_real, b_imag, stride, padding):
    """Pure-JAX f32 reference replicating the module's Gauss-trick forward."""
    dn = jax.lax.conv_dimension_numbers(x_real.shape, w_real.shape,
                                        ("NCHW", "OIHW", "NCHW"))
    conv = lambda x, w: jax.lax.conv_general_dilated(
        x, w, window_strides=(stride, stride),
        padding=[(padding, padding), (padding, padding)],
        dimension_numbers=dn)
    t1 = conv(x_real, w_real) + b_real[None, :, None, None]
    t2 = conv(x_imag, w_imag) + b_imag[None, :, None, None]
    t3 = conv(x_real + x_imag, w_real + w_imag) + (b_real + b_imag)[None, :, None, None]
    return jax.lax.complex(t1 - t2, t3 - t2 - t1)


if __name__ == "__main__":
    # Small deterministic problem: batch=2, Cin=4, Cout=8, 16x16, 3x3 conv,
    # stride=1, padding=1, groups=1, dilation=1, bias=True.
    N, CIN, COUT, H, W, KH, KW = 2, 4, 8, 16, 16, 3, 3
    STRIDE, PAD = 1, 1

    key = jax.random.PRNGKey(0)
    k_xr, k_xi, k_wr, k_wi, k_br, k_bi = jax.random.split(key, 6)

    x_real = jax.random.normal(k_xr, (N, CIN, H, W), dtype=jnp.float32)
    x_imag = jax.random.normal(k_xi, (N, CIN, H, W), dtype=jnp.float32)
    w_real = jax.random.normal(k_wr, (COUT, CIN, KH, KW), dtype=jnp.float32) * 0.1
    w_imag = jax.random.normal(k_wi, (COUT, CIN, KH, KW), dtype=jnp.float32) * 0.1
    b_real = jax.random.normal(k_br, (COUT,), dtype=jnp.float32) * 0.1
    b_imag = jax.random.normal(k_bi, (COUT,), dtype=jnp.float32) * 0.1

    out = complex_conv2d(x_real, x_imag, w_real, w_imag, b_real, b_imag,
                         stride=STRIDE, padding=PAD)
    out = jax.block_until_ready(out)

    ref = _reference(x_real, x_imag, w_real, w_imag, b_real, b_imag, STRIDE, PAD)
    assert out.shape == (N, COUT, H, W) and out.dtype == jnp.complex64
    # bf16 MXU inputs with f32 accumulation -> expect ~1e-3 abs error at these scales.
    assert jnp.allclose(out.real, ref.real, atol=2e-2, rtol=2e-2)
    assert jnp.allclose(out.imag, ref.imag, atol=2e-2, rtol=2e-2)

    print("KERNEL_OK")
</pallas_src>

<mosaic_0001>
module attributes {stable_mosaic.version = 11 : i64} {
  func.func @cplx_mm_kernel(%arg0: i32, %arg1: i32, %arg2: memref<256x48xbf16, #tpu.memory_space<vmem>>, %arg3: memref<256x48xbf16, #tpu.memory_space<vmem>>, %arg4: memref<1x48x256xbf16, #tpu.memory_space<vmem>>, %arg5: memref<1x1x128xf32, #tpu.memory_space<vmem>>, %arg6: memref<256x128xf32, #tpu.memory_space<vmem>>, %arg7: memref<256x128xf32, #tpu.memory_space<vmem>>) attributes {dimension_semantics = [#tpu.dimension_semantics<parallel>, #tpu.dimension_semantics<parallel>], iteration_bounds = array<i64: 2, 1>, scalar_prefetch = 0 : i64, scratch_operands = 0 : i64, tpu.core_type = #tpu.core_type<tc>, window_params = [{transform_indices = @transform_0, window_bounds = array<i64: 256, 48>}, {transform_indices = @transform_1, window_bounds = array<i64: 256, 48>}, {transform_indices = @transform_2, window_bounds = array<i64: 1, 48, 256>}, {transform_indices = @transform_3, window_bounds = array<i64: 1, 1, 128>}, {transform_indices = @transform_4, window_bounds = array<i64: 256, 128>}, {transform_indices = @transform_5, window_bounds = array<i64: 256, 128>}]} {
    %c0 = arith.constant 0 : index
    %c0_0 = arith.constant 0 : index
    %0 = vector.load %arg2[%c0, %c0_0] : memref<256x48xbf16, #tpu.memory_space<vmem>>, vector<256x48xbf16>
    %c0_1 = arith.constant 0 : index
    %c0_2 = arith.constant 0 : index
    %1 = vector.load %arg3[%c0_1, %c0_2] : memref<256x48xbf16, #tpu.memory_space<vmem>>, vector<256x48xbf16>
    %c0_3 = arith.constant 0 : index
    %c0_4 = arith.constant 0 : index
    %c0_5 = arith.constant 0 : index
    %2 = vector.load %arg4[%c0_3, %c0_4, %c0_5] : memref<1x48x256xbf16, #tpu.memory_space<vmem>>, vector<1x48x256xbf16>
    %3 = vector.shape_cast %2 : vector<1x48x256xbf16> to vector<48x256xbf16>
    %cst = arith.constant dense<0.000000e+00> : vector<256x256xf32>
    %4 = tpu.matmul %0, %3, %cst {dimension_numbers = #tpu.dot_dimension_numbers<[1], [0], [0], [1], [0, 0, 1, 1], [], []>} : vector<256x48xbf16>, vector<48x256xbf16>, vector<256x256xf32> -> vector<256x256xf32>
    %cst_6 = arith.constant dense<0.000000e+00> : vector<256x256xf32>
    %5 = tpu.matmul %1, %3, %cst_6 {dimension_numbers = #tpu.dot_dimension_numbers<[1], [0], [0], [1], [0, 0, 1, 1], [], []>} : vector<256x48xbf16>, vector<48x256xbf16>, vector<256x256xf32> -> vector<256x256xf32>
    %c0_7 = arith.constant 0 : index
    %c0_8 = arith.constant 0 : index
    %c0_9 = arith.constant 0 : index
    %6 = vector.load %arg5[%c0_7, %c0_8, %c0_9] : memref<1x1x128xf32, #tpu.memory_space<vmem>>, vector<1x1x128xf32>
    %7 = vector.shape_cast %6 : vector<1x1x128xf32> to vector<1x128xf32>
    %8 = vector.extract_strided_slice %4 {offsets = [0, 0], sizes = [256, 128], strides = [1, 1]} : vector<256x256xf32> to vector<256x128xf32>
    %9 = vector.extract_strided_slice %5 {offsets = [0, 128], sizes = [256, 128], strides = [1, 1]} : vector<256x256xf32> to vector<256x128xf32>
    %10 = arith.subf %8, %9 : vector<256x128xf32>
    %11 = vector.broadcast %7 : vector<1x128xf32> to vector<256x128xf32>
    %12 = arith.addf %10, %11 : vector<256x128xf32>
    %c0_10 = arith.constant 0 : index
    %c0_11 = arith.constant 0 : index
    %13 = vector.load %arg6[%c0_10, %c0_11] : memref<256x128xf32, #tpu.memory_space<vmem>>, vector<256x128xf32>
    tpu.vector_store %arg6[%c0_10, %c0_11], %12 {strides = array<i32>} : memref<256x128xf32, #tpu.memory_space<vmem>>, vector<256x128xf32>,
    %14 = vector.extract_strided_slice %4 {offsets = [0, 128], sizes = [256, 128], strides = [1, 1]} : vector<256x256xf32> to vector<256x128xf32>
    %15 = vector.extract_strided_slice %5 {offsets = [0, 0], sizes = [256, 128], strides = [1, 1]} : vector<256x256xf32> to vector<256x128xf32>
    %16 = arith.addf %14, %15 : vector<256x128xf32>
    %c0_12 = arith.constant 0 : index
    %c0_13 = arith.constant 0 : index
    %17 = vector.load %arg7[%c0_12, %c0_13] : memref<256x128xf32, #tpu.memory_space<vmem>>, vector<256x128xf32>
    tpu.vector_store %arg7[%c0_12, %c0_13], %16 {strides = array<i32>} : memref<256x128xf32, #tpu.memory_space<vmem>>, vector<256x128xf32>,
    return
  }
  func.func @transform_0(%arg0: i32, %arg1: i32) -> (i32, i32) {
    %c0_i32 = arith.constant 0 : i32
    %c0_i32_0 = arith.constant 0 : i32
    return %arg0, %c0_i32 : i32, i32
  }
  func.func @transform_1(%arg0: i32, %arg1: i32) -> (i32, i32) {
    %c0_i32 = arith.constant 0 : i32
    %c0_i32_0 = arith.constant 0 : i32
    return %arg0, %c0_i32 : i32, i32
  }
  func.func @transform_2(%arg0: i32, %arg1: i32) -> (i32, i32, i32) {
    %c0_i32 = arith.constant 0 : i32
    %c0_i32_0 = arith.constant 0 : i32
    %c0_i32_1 = arith.constant 0 : i32
    return %arg1, %c0_i32, %c0_i32_0 : i32, i32, i32
  }
  func.func @transform_3(%arg0: i32, %arg1: i32) -> (i32, i32, i32) {
    %c0_i32 = arith.constant 0 : i32
    %c0_i32_0 = arith.constant 0 : i32
    %c0_i32_1 = arith.constant 0 : i32
    return %arg1, %c0_i32, %c0_i32_0 : i32, i32, i32
  }
  func.func @transform_4(%arg0: i32, %arg1: i32) -> (i32, i32) {
    %c0_i32 = arith.constant 0 : i32
    return %arg0, %arg1 : i32, i32
  }
  func.func @transform_5(%arg0: i32, %arg1: i32) -> (i32, i32) {
    %c0_i32 = arith.constant 0 : i32
    return %arg0, %arg1 : i32, i32
  }
}

</mosaic_0001>

<llo_original>
// kernel: tpu_custom_call.1
$region0: #{tpu_custom_call.1}
  #allocation0 [shape = 'u32[]', space=smem, size = 0x4, offset = 0x4, fixed_abs, tag = 'smem constant byte address 0x4 - core index']
  #allocation1 [shape = 'u32[144,128]{1,0:T(1,128)}', space=vmem, size = 0x12000, scoped, tag = 'internal scratch']
  %s0 = inlined_call_operand.vmem [shape: bf16[512,48], index: 0, kind: input, shape index: {}]
  %s1 = inlined_call_operand.vmem [shape: bf16[512,48], index: 1, kind: input, shape index: {}]
  %s2 = inlined_call_operand.vmem [shape: bf16[1,48,256], index: 2, kind: input, shape index: {}]
  %s3 = inlined_call_operand.vmem [shape: f32[1,1,128], index: 3, kind: input, shape index: {}]
  %s4 = inlined_call_operand.hbm [shape: f32[512,128], index: 4, kind: output, shape index: {0}]
  %s5 = inlined_call_operand.hbm [shape: f32[512,128], index: 5, kind: output, shape index: {1}]
  %6 = xla_tuple %s4, %s5
  %s7 = sld [smem:[#allocation0]]
  $region57: #{tpu_custom_call.1} parent=0
    _
  %s9 = ssub.s32 1, %s7
  %s10 = scalar_select 0, %s9, %s7
  $region1: #{tpu_custom_call.1} parent=0
    #allocation2 [shape = 'u8[262144]{0}', space=vmem, size = 0x40000, scoped, tag = 'output window, operand 0']
    #allocation3 [shape = 's32[2]{0}', space=sflag, size = 0x8, scoped, tag = 'scoped memory for tpu_custom_call.1']
    #allocation4 [shape = 'u8[262144]{0}', space=vmem, size = 0x40000, scoped, tag = 'output window, operand 1']
    #allocation5 [shape = 's32[2]{0}', space=sflag, size = 0x8, scoped, tag = 'scoped memory for tpu_custom_call.1']
    %11 = vsyncpa [#allocation3], 0
    %s12 = scalar_lea.sflag [#allocation3], 1
    %13 = vsyncpa %s12, 0
    %14 = vsyncpa [#allocation5], 0
    %s15 = scalar_lea.sflag [#allocation5], 1
    %16 = vsyncpa %s15, 0
    loop: start=0, step=1, limit=4
    $region2: #{tpu_custom_call.1} parent=1 // loop_pre_header
      _
    $region3: #{tpu_custom_call.1} parent=1 // loop_header
      %s18 = sphi 0, %s22
      %p19 = scmp.ge.s32.totalorder %s18, 4
      %s25 = sphi 0, %s37
      %s26 = sphi 0, %s33
      %s27 = sphi 0, %s25
      %s28 = sphi 0, %s26
      %s29 = sphi 0, %s27
      %s30 = sphi 0, %s28
      %s40 = sphi 0, %s42
      %s43 = sphi 0, %s40
      %s44 = sphi 0, %s43
      %s60 = sphi 0, %s44
      %s66 = sphi 0, %s68
      %s69 = sphi 0, %s66
      %s70 = sphi 0, %s69
      %s86 = sphi 0, %s70
      %s92 = sphi 0, %s94
      %s95 = sphi 0, %s92
      %s96 = sphi 0, %s95
      %s112 = sphi 0, %s96
      %s118 = sphi 0, %s120
      %s121 = sphi 0, %s118
      %s122 = sphi 0, %s121
      %s138 = sphi 0, %s122
      %s146 = sphi 0, %s148
      %s149 = sphi 0, %s146
      %s150 = sphi 0, %s149
      %s166 = sphi 0, %s150
      %s174 = sphi 0, %s176
      %s177 = sphi 0, %s174
      %s178 = sphi 0, %s177
      %s194 = sphi 0, %s178
    $region4: #{tpu_custom_call.1} parent=1 // loop_header_branch
      %21 = sbr.rel (%p19) target = $region8
    $region5: #{tpu_custom_call.1} parent=1 // loop_body
      %s23 = ssub.s32 %s18, 1
      %s24 = ssub.s32 %s18, 2
      %s31 = sadd.s32 1, %s26
      %p32 = scmp.ge.s32.totalorder %s31, 1
      %s33 = scalar_select %p32, 0, %s31
      %s34 = sadd.s32 1, %s25
      %s35 = scalar_select %p32, %s34, %s25
      %p36 = scmp.ge.s32.totalorder %s35, 2
      %s37 = scalar_select %p36, 0, %s35
      %s38 = ssub.s32 %s25, %s37
      %p39 = scmp.eq.s32.totalorder %s38, 0
      %s41 = sadd.s32 %s40, 1
      %s42 = scalar_select %p39, %s40, %s41
      %p45 = pneg %p39
      %p46 = scmp.eq.s32.totalorder %s18, 1
      %p47 = por %p45, %p46
      %p48 = scmp.ne.s32.totalorder %s40, %s43
      %p49 = scmp.eq.s32.totalorder %s18, 0
      %p50 = por %p48, %p49
      %p51 = scmp.ne.s32.totalorder %s40, %s43
      %p52 = scmp.eq.s32.totalorder %s23, 1
      %p53 = por %p51, %p52
      %p54 = scmp.ne.s32.totalorder %s43, %s44
      %p55 = scmp.eq.s32.totalorder %s23, 0
      %p56 = por %p54, %p55
      %p57 = scmp.ne.s32.totalorder %s43, %s44
      %p58 = scmp.eq.s32.totalorder %s24, 1
      %p59 = por %p57, %p58
      %p61 = scmp.ne.s32.totalorder %s44, %s60
      %p62 = scmp.eq.s32.totalorder %s24, 0
      %p63 = por %p61, %p62
      %s64 = ssub.s32 %s25, %s37
      %p65 = scmp.eq.s32.totalorder %s64, 0
      %s67 = sadd.s32 %s66, 1
      %s68 = scalar_select %p65, %s66, %s67
      %p71 = pneg %p65
      %p72 = scmp.eq.s32.totalorder %s18, 1
      %p73 = por %p71, %p72
      %p74 = scmp.ne.s32.totalorder %s66, %s69
      %p75 = scmp.eq.s32.totalorder %s18, 0
      %p76 = por %p74, %p75
      %p77 = scmp.ne.s32.totalorder %s66, %s69
      %p78 = scmp.eq.s32.totalorder %s23, 1
      %p79 = por %p77, %p78
      %p80 = scmp.ne.s32.totalorder %s69, %s70
      %p81 = scmp.eq.s32.totalorder %s23, 0
      %p82 = por %p80, %p81
      %p83 = scmp.ne.s32.totalorder %s69, %s70
      %p84 = scmp.eq.s32.totalorder %s24, 1
      %p85 = por %p83, %p84
      %p87 = scmp.ne.s32.totalorder %s70, %s86
      %p88 = scmp.eq.s32.totalorder %s24, 0
      %p89 = por %p87, %p88
      %s90 = ssub.s32 %s26, %s33
      %p91 = scmp.eq.s32.totalorder %s90, 0
      %s93 = sadd.s32 %s92, 1
      %s94 = scalar_select %p91, %s92, %s93
      %p97 = pneg %p91
      %p98 = scmp.eq.s32.totalorder %s18, 1
      %p99 = por %p97, %p98
      %p100 = scmp.ne.s32.totalorder %s92, %s95
      %p101 = scmp.eq.s32.totalorder %s18, 0
      %p102 = por %p100, %p101
      %p103 = scmp.ne.s32.totalorder %s92, %s95
      %p104 = scmp.eq.s32.totalorder %s23, 1
      %p105 = por %p103, %p104
      %p106 = scmp.ne.s32.totalorder %s95, %s96
      %p107 = scmp.eq.s32.totalorder %s23, 0
      %p108 = por %p106, %p107
      %p109 = scmp.ne.s32.totalorder %s95, %s96
      %p110 = scmp.eq.s32.totalorder %s24, 1
      %p111 = por %p109, %p110
      %p113 = scmp.ne.s32.totalorder %s96, %s112
      %p114 = scmp.eq.s32.totalorder %s24, 0
      %p115 = por %p113, %p114
      %s116 = ssub.s32 %s26, %s33
      %p117 = scmp.eq.s32.totalorder %s116, 0
      %s119 = sadd.s32 %s118, 1
      %s120 = scalar_select %p117, %s118, %s119
      %p123 = pneg %p117
      %p124 = scmp.eq.s32.totalorder %s18, 1
      %p125 = por %p123, %p124
      %p126 = scmp.ne.s32.totalorder %s118, %s121
      %p127 = scmp.eq.s32.totalorder %s18, 0
      %p128 = por %p126, %p127
      %p129 = scmp.ne.s32.totalorder %s118, %s121
      %p130 = scmp.eq.s32.totalorder %s23, 1
      %p131 = por %p129, %p130
      %p132 = scmp.ne.s32.totalorder %s121, %s122
      %p133 = scmp.eq.s32.totalorder %s23, 0
      %p134 = por %p132, %p133
      %p135 = scmp.ne.s32.totalorder %s121, %s122
      %p136 = scmp.eq.s32.totalorder %s24, 1
      %p137 = por %p135, %p136
      %p139 = scmp.ne.s32.totalorder %s122, %s138
      %p140 = scmp.eq.s32.totalorder %s24, 0
      %p141 = por %p139, %p140
      %s142 = ssub.s32 %s25, %s37
      %s143 = ssub.s32 %s26, %s33
      %s144 = sor.u32 %s142, %s143
      %p145 = scmp.eq.s32.totalorder %s144, 0
      %s147 = sadd.s32 %s146, 1
      %s148 = scalar_select %p145, %s146, %s147
      %p151 = pneg %p145
      %p152 = scmp.eq.s32.totalorder %s18, 1
      %p153 = por %p151, %p152
      %p154 = scmp.ne.s32.totalorder %s146, %s149
      %p155 = scmp.eq.s32.totalorder %s18, 0
      %p156 = por %p154, %p155
      %p157 = scmp.ne.s32.totalorder %s146, %s149
      %p158 = scmp.eq.s32.totalorder %s23, 1
      %p159 = por %p157, %p158
      %p160 = scmp.ne.s32.totalorder %s149, %s150
      %p161 = scmp.eq.s32.totalorder %s23, 0
      %p162 = por %p160, %p161
      %p163 = scmp.ne.s32.totalorder %s149, %s150
      %p164 = scmp.eq.s32.totalorder %s24, 1
      %p165 = por %p163, %p164
      %p167 = scmp.ne.s32.totalorder %s150, %s166
      %p168 = scmp.eq.s32.totalorder %s24, 0
      %p169 = por %p167, %p168
      %s170 = ssub.s32 %s25, %s37
      %s171 = ssub.s32 %s26, %s33
      %s172 = sor.u32 %s170, %s171
      %p173 = scmp.eq.s32.totalorder %s172, 0
      %s175 = sadd.s32 %s174, 1
      %s176 = scalar_select %p173, %s174, %s175
      %p179 = pneg %p173
      %p180 = scmp.eq.s32.totalorder %s18, 1
      %p181 = por %p179, %p180
      %p182 = scmp.ne.s32.totalorder %s174, %s177
      %p183 = scmp.eq.s32.totalorder %s18, 0
      %p184 = por %p182, %p183
      %p185 = scmp.ne.s32.totalorder %s174, %s177
      %p186 = scmp.eq.s32.totalorder %s23, 1
      %p187 = por %p185, %p186
      %p188 = scmp.ne.s32.totalorder %s177, %s178
      %p189 = scmp.eq.s32.totalorder %s23, 0
      %p190 = por %p188, %p189
      %p191 = scmp.ne.s32.totalorder %s177, %s178
      %p192 = scmp.eq.s32.totalorder %s24, 1
      %p193 = por %p191, %p192
      %p195 = scmp.ne.s32.totalorder %s178, %s194
      %p196 = scmp.eq.s32.totalorder %s24, 0
      %p197 = por %p195, %p196
      %p198 = scmp.le.s32.totalorder 1, %s18
      %p199 = scmp.lt.s32.totalorder %s18, 3
      %p200 = pnand %p198, %p199
      %p201 = pneg %p200
      // Predicated region
      $region9: #{tpu_custom_call.1} parent=5 // pred_check
        _
      $region10: #{tpu_custom_call.1} parent=5 // pred_check_branch
        %203 = sbr.rel (%p200) target = $region12
      $region11: #{tpu_custom_call.1} parent=5 // pred_region
        %s204 = ssub.s32 %s18, 1
        // Predicated region
        $region13: #{tpu_custom_call.1} parent=11 // pred_check
          %p205 = pneg %p108
        $region14: #{tpu_custom_call.1} parent=11 // pred_check_branch
          %207 = sbr.rel (%p205) target = $region16
        $region15: #{tpu_custom_call.1} parent=11 // pred_region
          %p208 = scmp.lt.s32.totalorder %s28, 0
          %s209 = scalar_select %p208, %s28, 0
          %s210 = smul.addr %s209, 12
          %s211 = smul.addr %s210, 4
          %s212 = scalar_lea.vmem %s2, %s211
        $region16: #{tpu_custom_call.1} parent=11 // pred_fallthru
          _
        // Predicated region
        $region17: #{tpu_custom_call.1} parent=11 // pred_check
          %p213 = pneg %p134
        $region18: #{tpu_custom_call.1} parent=11 // pred_check_branch
          %215 = sbr.rel (%p213) target = $region20
        $region19: #{tpu_custom_call.1} parent=11 // pred_region
          %p216 = scmp.lt.s32.totalorder %s28, 0
          %s217 = scalar_select %p216, %s28, 0
          %s218 = scalar_lea.vmem %s3, %s217
        $region20: #{tpu_custom_call.1} parent=11 // pred_fallthru
          _
      $region12: #{tpu_custom_call.1} parent=5 // pred_fallthru
        _
      %p219 = scmp.lt.s32.totalorder %s18, 2
      // Predicated region
      $region21: #{tpu_custom_call.1} parent=5 // pred_check
        %p220 = pneg %p219
      $region22: #{tpu_custom_call.1} parent=5 // pred_check_branch
        %222 = sbr.rel (%p220) target = $region24
      $region23: #{tpu_custom_call.1} parent=5 // pred_region
        // Predicated region
        $region25: #{tpu_custom_call.1} parent=23 // pred_check
          %p223 = pneg %p50
        $region26: #{tpu_custom_call.1} parent=23 // pred_check_branch
          %225 = sbr.rel (%p223) target = $region28
        $region27: #{tpu_custom_call.1} parent=23 // pred_region
          %s226 = smul.u32 32, %s25
          %p227 = scmp.lt.s32.totalorder %s226, 63
          %s228 = scalar_select %p227, %s226, 63
          %s229 = smul.addr %s228, 4
          %s230 = scalar_lea.vmem %s0, %s229
          %s231 = smul.u32 32, %s25
        $region28: #{tpu_custom_call.1} parent=23 // pred_fallthru
          _
        // Predicated region
        $region29: #{tpu_custom_call.1} parent=23 // pred_check
          %p232 = pneg %p76
        $region30: #{tpu_custom_call.1} parent=23 // pred_check_branch
          %234 = sbr.rel (%p232) target = $region32
        $region31: #{tpu_custom_call.1} parent=23 // pred_region
          %s235 = smul.u32 32, %s25
          %p236 = scmp.lt.s32.totalorder %s235, 63
          %s237 = scalar_select %p236, %s235, 63
          %s238 = smul.addr %s237, 4
          %s239 = scalar_lea.vmem %s1, %s238
          %s240 = smul.u32 32, %s25
        $region32: #{tpu_custom_call.1} parent=23 // pred_fallthru
          _
      $region24: #{tpu_custom_call.1} parent=5 // pred_fallthru
        _
      %p241 = scmp.le.s32.totalorder 1, %s18
      %p242 = scmp.lt.s32.totalorder %s18, 3
      %p243 = pnand %p241, %p242
      %p244 = pneg %p243
      // Predicated region
      $region33: #{tpu_custom_call.1} parent=5 // pred_check
        _
      $region34: #{tpu_custom_call.1} parent=5 // pred_check_branch
        %246 = sbr.rel (%p243) target = $region36
      $region35: #{tpu_custom_call.1} parent=5 // pred_region
        %s247 = ssub.s32 %s18, 1
        %s248 = smul.u32 32, %s27
        %p249 = scmp.lt.s32.totalorder %s248, 63
        %s250 = scalar_select %p249, %s248, 63
        %s251 = smul.addr %s250, 4
        %s252 = scalar_lea.vmem %s0, %s251
        %p253 = pneg %p56
        %p254 = pneg %p53
        %s255 = smul.u32 32, %s27
        %p256 = scmp.lt.s32.totalorder %s255, 63
        %s257 = scalar_select %p256, %s255, 63
        %s258 = smul.addr %s257, 4
        %s259 = scalar_lea.vmem %s1, %s258
        %p260 = pneg %p82
        %p261 = pneg %p79
        %p262 = scmp.lt.s32.totalorder %s28, 0
        %s263 = scalar_select %p262, %s28, 0
        %s264 = smul.addr %s263, 12
        %s265 = smul.addr %s264, 4
        %s266 = scalar_lea.vmem %s2, %s265
        %p267 = pneg %p108
        %p268 = pneg %p105
        %p269 = scmp.lt.s32.totalorder %s28, 0
        %s270 = scalar_select %p269, %s28, 0
        %s271 = scalar_lea.vmem %s3, %s270
        %p272 = pneg %p134
        %p273 = pneg %p131
        %p274 = pneg %p162
        %p275 = pneg %p159
        %s276 = sand.u32 %s149, 1
        %s277 = scalar_lea.sflag [#allocation3], %s276
        %s278 = sand.u32 %s149, 1
        %s279 = smul.addr %s278, 256
        %s280 = scalar_lea.vmem [#allocation2], %s279
        %p281 = pneg %p190
        %p282 = pneg %p187
        %s283 = sand.u32 %s177, 1
        %s284 = scalar_lea.sflag [#allocation5], %s283
        %s285 = sand.u32 %s177, 1
        %s286 = smul.addr %s285, 256
        %s287 = scalar_lea.vmem [#allocation4], %s286
        %s288 = smul.u32 32, %s27
        %p289 = scmp.lt.s32.totalorder %s288, 63
        %s290 = scalar_select %p289, %s288, 63
        %s291 = smul.addr %s290, 4
        %s292 = scalar_lea.vmem %s0, %s291
        %s293 = smul.u32 32, %s27
        %s294 = smul.u32 32, %s27
        %p295 = scmp.lt.s32.totalorder %s294, 63
        %s296 = scalar_select %p295, %s294, 63
        %s297 = smul.addr %s296, 4
        %s298 = scalar_lea.vmem %s1, %s297
        %s299 = smul.u32 32, %s27
        %p300 = scmp.lt.s32.totalorder %s28, 0
        %s301 = scalar_select %p300, %s28, 0
        %s302 = smul.addr %s301, 12
        %s303 = smul.addr %s302, 4
        %s304 = scalar_lea.vmem %s2, %s303
        %p305 = scmp.lt.s32.totalorder %s28, 0
        %s306 = scalar_select %p305, %s28, 0
        %s307 = scalar_lea.vmem %s3, %s306
        %s308 = smul.u32 32, %s27
        %s309 = smul.u32 32, %s27
        %v311 = vld [vmem:[%s292] sm:$0xf]
        %v312 = vld [vmem:[%s292 + $0x4] sm:$0xf]
        %v313 = vld [vmem:[%s292 + $0x8] sm:$0xf]
        %v314 = vld [vmem:[%s292 + $0xc] sm:$0xf]
        %v315 = vld [vmem:[%s292 + $0x10] sm:$0xf]
        %v316 = vld [vmem:[%s292 + $0x14] sm:$0xf]
        %v317 = vld [vmem:[%s292 + $0x18] sm:$0xf]
        %v318 = vld [vmem:[%s292 + $0x1c] sm:$0xf]
        %v319 = vld [vmem:[%s292 + $0x20] sm:$0xf]
        %v320 = vld [vmem:[%s292 + $0x24] sm:$0xf]
        %v321 = vld [vmem:[%s292 + $0x28] sm:$0xf]
        %v322 = vld [vmem:[%s292 + $0x2c] sm:$0xf]
        %v323 = vld [vmem:[%s292 + $0x30] sm:$0xf]
        %v324 = vld [vmem:[%s292 + $0x34] sm:$0xf]
        %v325 = vld [vmem:[%s292 + $0x38] sm:$0xf]
        %v326 = vld [vmem:[%s292 + $0x3c] sm:$0xf]
        %v327 = vld [vmem:[%s292 + $0x40] sm:$0xf]
        %v328 = vld [vmem:[%s292 + $0x44] sm:$0xf]
        %v329 = vld [vmem:[%s292 + $0x48] sm:$0xf]
        %v330 = vld [vmem:[%s292 + $0x4c] sm:$0xf]
        %v331 = vld [vmem:[%s292 + $0x50] sm:$0xf]
        %v332 = vld [vmem:[%s292 + $0x54] sm:$0xf]
        %v333 = vld [vmem:[%s292 + $0x58] sm:$0xf]
        %v334 = vld [vmem:[%s292 + $0x5c] sm:$0xf]
        %v335 = vld [vmem:[%s292 + $0x60] sm:$0xf]
        %v336 = vld [vmem:[%s292 + $0x64] sm:$0xf]
        %v337 = vld [vmem:[%s292 + $0x68] sm:$0xf]
        %v338 = vld [vmem:[%s292 + $0x6c] sm:$0xf]
        %v339 = vld [vmem:[%s292 + $0x70] sm:$0xf]
        %v340 = vld [vmem:[%s292 + $0x74] sm:$0xf]
        %v341 = vld [vmem:[%s292 + $0x78] sm:$0xf]
        %v342 = vld [vmem:[%s292 + $0x7c] sm:$0xf]
        %v343 = vld [vmem:[%s298] sm:$0xf]
        %v344 = vld [vmem:[%s298 + $0x4] sm:$0xf]
        %v345 = vld [vmem:[%s298 + $0x8] sm:$0xf]
        %v346 = vld [vmem:[%s298 + $0xc] sm:$0xf]
        %v347 = vld [vmem:[%s298 + $0x10] sm:$0xf]
        %v348 = vld [vmem:[%s298 + $0x14] sm:$0xf]
        %v349 = vld [vmem:[%s298 + $0x18] sm:$0xf]
        %v350 = vld [vmem:[%s298 + $0x1c] sm:$0xf]
        %v351 = vld [vmem:[%s298 + $0x20] sm:$0xf]
        %v352 = vld [vmem:[%s298 + $0x24] sm:$0xf]
        %v353 = vld [vmem:[%s298 + $0x28] sm:$0xf]
        %v354 = vld [vmem:[%s298 + $0x2c] sm:$0xf]
        %v355 = vld [vmem:[%s298 + $0x30] sm:$0xf]
        %v356 = vld [vmem:[%s298 + $0x34] sm:$0xf]
        %v357 = vld [vmem:[%s298 + $0x38] sm:$0xf]
        %v358 = vld [vmem:[%s298 + $0x3c] sm:$0xf]
        %v359 = vld [vmem:[%s298 + $0x40] sm:$0xf]
        %v360 = vld [vmem:[%s298 + $0x44] sm:$0xf]
        %v361 = vld [vmem:[%s298 + $0x48] sm:$0xf]
        %v362 = vld [vmem:[%s298 + $0x4c] sm:$0xf]
        %v363 = vld [vmem:[%s298 + $0x50] sm:$0xf]
        %v364 = vld [vmem:[%s298 + $0x54] sm:$0xf]
        %v365 = vld [vmem:[%s298 + $0x58] sm:$0xf]
        %v366 = vld [vmem:[%s298 + $0x5c] sm:$0xf]
        %v367 = vld [vmem:[%s298 + $0x60] sm:$0xf]
        %v368 = vld [vmem:[%s298 + $0x64] sm:$0xf]
        %v369 = vld [vmem:[%s298 + $0x68] sm:$0xf]
        %v370 = vld [vmem:[%s298 + $0x6c] sm:$0xf]
        %v371 = vld [vmem:[%s298 + $0x70] sm:$0xf]
        %v372 = vld [vmem:[%s298 + $0x74] sm:$0xf]
        %v373 = vld [vmem:[%s298 + $0x78] sm:$0xf]
        %v374 = vld [vmem:[%s298 + $0x7c] sm:$0xf]
        %v375 = vld [vmem:[%s304] sm:$0xff]
        %v376 = vld [vmem:[%s304 + $0x8] sm:$0xff]
        %v377 = vld [vmem:[%s304 + $0x10] sm:$0xff]
        %v378 = vld [vmem:[%s304 + $0x18] sm:$0xff]
        %v379 = vld [vmem:[%s304 + $0x20] sm:$0xff]
        %v380 = vld [vmem:[%s304 + $0x28] sm:$0xff]
        %v413 = vunpack.c.l.b16 %v311
        %v414 = vunpack.c.l.b16 %v312
        %v415 = vunpack.c.l.b16 %v313
        %v416 = vunpack.c.l.b16 %v314
        %v417 = vunpack.c.l.b16 %v315
        %v418 = vunpack.c.l.b16 %v316
        %v419 = vunpack.c.l.b16 %v317
        %v420 = vunpack.c.l.b16 %v318
        %v421 = vunpack.c.l.b16 %v319
        %v422 = vunpack.c.l.b16 %v320
        %v423 = vunpack.c.l.b16 %v321
        %v424 = vunpack.c.l.b16 %v322
        %v425 = vunpack.c.l.b16 %v323
        %v426 = vunpack.c.l.b16 %v324
        %v427 = vunpack.c.l.b16 %v325
        %v428 = vunpack.c.l.b16 %v326
        %v429 = vunpack.c.l.b16 %v327
        %v430 = vunpack.c.l.b16 %v328
        %v431 = vunpack.c.l.b16 %v329
        %v432 = vunpack.c.l.b16 %v330
        %v433 = vunpack.c.l.b16 %v331
        %v434 = vunpack.c.l.b16 %v332
        %v435 = vunpack.c.l.b16 %v333
        %v436 = vunpack.c.l.b16 %v334
        %v437 = vunpack.c.l.b16 %v335
        %v438 = vunpack.c.l.b16 %v336
        %v439 = vunpack.c.l.b16 %v337
        %v440 = vunpack.c.l.b16 %v338
        %v441 = vunpack.c.l.b16 %v339
        %v442 = vunpack.c.l.b16 %v340
        %v443 = vunpack.c.l.b16 %v341
        %v444 = vunpack.c.l.b16 %v342
        %v445 = vpack.c.b16 %v414, %v413
        %v446 = vpack.c.b16 %v416, %v415
        %v447 = vpack.c.b16 %v418, %v417
        %v448 = vpack.c.b16 %v420, %v419
        %v449 = vpack.c.b16 %v422, %v421
        %v450 = vpack.c.b16 %v424, %v423
        %v451 = vpack.c.b16 %v426, %v425
        %v452 = vpack.c.b16 %v428, %v427
        %v453 = vpack.c.b16 %v430, %v429
        %v454 = vpack.c.b16 %v432, %v431
        %v455 = vpack.c.b16 %v434, %v433
        %v456 = vpack.c.b16 %v436, %v435
        %v457 = vpack.c.b16 %v438, %v437
        %v458 = vpack.c.b16 %v440, %v439
        %v459 = vpack.c.b16 %v442, %v441
        %v460 = vpack.c.b16 %v444, %v443
        %v467 = vunpack.c.l.b16 %v375
        %v468 = vunpack.c.h.b16 %v375
        %v469 = vunpack.c.l.b16 %v376
        %v470 = vunpack.c.h.b16 %v376
        %v471 = vunpack.c.l.b16 %v377
        %v472 = vunpack.c.h.b16 %v377
        %v473 = vunpack.c.l.b16 %v378
        %v474 = vunpack.c.h.b16 %v378
        %v475 = vunpack.c.l.b16 %v379
        %v476 = vunpack.c.h.b16 %v379
        %v477 = vunpack.c.l.b16 %v380
        %v478 = vunpack.c.h.b16 %v380
        %v479 = vpack.c.b16 %v469, %v467
        %v480 = vpack.c.b16 %v470, %v468
        %v481 = vpack.c.b16 %v473, %v471
        %v482 = vpack.c.b16 %v474, %v472
        %v483 = vpack.c.b16 %v477, %v475
        %v484 = vpack.c.b16 %v478, %v476
        %vm491 = vcmask 392192
        %v493 = vsel %vm491, %v445, 0
        %v496 = vsel %vm491, %v446, 0
        %v499 = vsel %vm491, %v447, 0
        %v502 = vsel %vm491, %v448, 0
        %v505 = vsel %vm491, %v449, 0
        %v508 = vsel %vm491, %v450, 0
        %v511 = vsel %vm491, %v451, 0
        %v514 = vsel %vm491, %v452, 0
        %v517 = vsel %vm491, %v453, 0
        %v520 = vsel %vm491, %v454, 0
        %v523 = vsel %vm491, %v455, 0
        %v526 = vsel %vm491, %v456, 0
        %v529 = vsel %vm491, %v457, 0
        %v532 = vsel %vm491, %v458, 0
        %v535 = vsel %vm491, %v459, 0
        %v538 = vsel %vm491, %v460, 0
        %540 = vmatprep.subr.bf16.mxu0 %v480
        %541 = vmatpush1.bf16.msra.mxu0 %v479
        %542 = vmatprep.subr.bf16.mxu0 %v482
        %543 = vmatpush1.bf16.msra.mxu0 %v481
        %544 = vmatprep.subr.bf16.mxu0 %v484
        %545 = vmatpush1.bf16.msra.mxu0 %v483
        %546 = vmatprep.subr.bf16.mxu0 0
        %547 = vmatpush1.bf16.msra.mxu0 0
        %548 = vmatprep.subr.bf16.mxu0 0
        %549 = vmatpush1.bf16.msra.mxu0 0
        %550 = vmatprep.subr.bf16.mxu0 0
        %551 = vmatpush1.bf16.msra.mxu0 0
        %552 = vmatprep.subr.bf16.mxu0 0
        %553 = vmatpush1.bf16.msra.mxu0 0
        %554 = vmatprep.subr.bf16.mxu0 0
        %555 = vmatpush1.bf16.msra.mxu0 0
        %556 = vmatprep.subr.bf16.mxu0 0
        %557 = vmatpush1.bf16.msra.mxu0 0
        %558 = vmatprep.subr.bf16.mxu0 0
        %559 = vmatpush1.bf16.msra.mxu0 0
        %560 = vmatprep.subr.bf16.mxu0 0
        %561 = vmatpush1.bf16.msra.mxu0 0
        %562 = vmatprep.subr.bf16.mxu0 0
        %563 = vmatpush1.bf16.msra.mxu0 0
        %564 = vmatprep.subr.bf16.mxu0 0
        %565 = vmatpush1.bf16.msra.mxu0 0
        %566 = vmatprep.subr.bf16.mxu0 0
        %567 = vmatpush1.bf16.msra.mxu0 0
        %568 = vmatprep.subr.bf16.mxu0 0
        %569 = vmatpush1.bf16.msra.mxu0 0
        %570 = vmatprep.subr.bf16.mxu0 0
        %571 = vmatpush1.bf16.msra.mxu0 0
        %572 = vmatprep.mubr.bf16.mxu0 0
        %573 = vmatmul.mubr.bf16.gmra.mrb[0].mxu0 %v493
        %v574 = vpop.f32.mrb[0].mxu0
        %v575 = vadd.f32 0.0, %v574
        %v576 = vpop.f32.mrb[0].mxu0
        %v577 = vadd.f32 0.0, %v576
        %v578 = vpop.f32.mrb[0].mxu0
        %v579 = vadd.f32 0.0, %v578
        %v580 = vpop.f32.mrb[0].mxu0
        %v581 = vadd.f32 0.0, %v580
        %582 = vmatprep.mubr.bf16.mxu0 0
        %583 = vmatmul.mubr.bf16.gmra.mrb[0].mxu0 %v496
        %v584 = vpop.f32.mrb[0].mxu0
        %v585 = vadd.f32 0.0, %v584
        %v586 = vpop.f32.mrb[0].mxu0
        %v587 = vadd.f32 0.0, %v586
        %v588 = vpop.f32.mrb[0].mxu0
        %v589 = vadd.f32 0.0, %v588
        %v590 = vpop.f32.mrb[0].mxu0
        %v591 = vadd.f32 0.0, %v590
        %592 = vmatprep.mubr.bf16.mxu0 0
        %593 = vmatmul.mubr.bf16.gmra.mrb[0].mxu0 %v499
        %v594 = vpop.f32.mrb[0].mxu0
        %v595 = vadd.f32 0.0, %v594
        %v596 = vpop.f32.mrb[0].mxu0
        %v597 = vadd.f32 0.0, %v596
        %v598 = vpop.f32.mrb[0].mxu0
        %v599 = vadd.f32 0.0, %v598
        %v600 = vpop.f32.mrb[0].mxu0
        %v601 = vadd.f32 0.0, %v600
        %602 = vmatprep.mubr.bf16.mxu0 0
        %603 = vmatmul.mubr.bf16.gmra.mrb[0].mxu0 %v502
        %v604 = vpop.f32.mrb[0].mxu0
        %v605 = vadd.f32 0.0, %v604
        %v606 = vpop.f32.mrb[0].mxu0
        %v607 = vadd.f32 0.0, %v606
        %v608 = vpop.f32.mrb[0].mxu0
        %v609 = vadd.f32 0.0, %v608
        %v610 = vpop.f32.mrb[0].mxu0
        %v611 = vadd.f32 0.0, %v610
        %612 = vmatprep.mubr.bf16.mxu0 0
        %613 = vmatmul.mubr.bf16.gmra.mrb[0].mxu0 %v505
        %v614 = vpop.f32.mrb[0].mxu0
        %v615 = vadd.f32 0.0, %v614
        %v616 = vpop.f32.mrb[0].mxu0
        %v617 = vadd.f32 0.0, %v616
        %v618 = vpop.f32.mrb[0].mxu0
        %v619 = vadd.f32 0.0, %v618
        %v620 = vpop.f32.mrb[0].mxu0
        %v621 = vadd.f32 0.0, %v620
        %622 = vmatprep.mubr.bf16.mxu0 0
        %623 = vmatmul.mubr.bf16.gmra.mrb[0].mxu0 %v508
        %v624 = vpop.f32.mrb[0].mxu0
        %v625 = vadd.f32 0.0, %v624
        %v626 = vpop.f32.mrb[0].mxu0
        %v627 = vadd.f32 0.0, %v626
        %v628 = vpop.f32.mrb[0].mxu0
        %v629 = vadd.f32 0.0, %v628
        %v630 = vpop.f32.mrb[0].mxu0
        %v631 = vadd.f32 0.0, %v630
        %632 = vmatprep.mubr.bf16.mxu0 0
        %633 = vmatmul.mubr.bf16.gmra.mrb[0].mxu0 %v511
        %v634 = vpop.f32.mrb[0].mxu0
        %v635 = vadd.f32 0.0, %v634
        %v636 = vpop.f32.mrb[0].mxu0
        %v637 = vadd.f32 0.0, %v636
        %v638 = vpop.f32.mrb[0].mxu0
        %v639 = vadd.f32 0.0, %v638
        %v640 = vpop.f32.mrb[0].mxu0
        %v641 = vadd.f32 0.0, %v640
        %642 = vmatprep.mubr.bf16.mxu0 0
        %643 = vmatmul.mubr.bf16.gmra.mrb[0].mxu0 %v514
        %v644 = vpop.f32.mrb[0].mxu0
        %v645 = vadd.f32 0.0, %v644
        %v646 = vpop.f32.mrb[0].mxu0
        %v647 = vadd.f32 0.0, %v646
        %v648 = vpop.f32.mrb[0].mxu0
        %v649 = vadd.f32 0.0, %v648
        %v650 = vpop.f32.mrb[0].mxu0
        %v651 = vadd.f32 0.0, %v650
        %652 = vmatprep.mubr.bf16.mxu0 0
        %653 = vmatmul.mubr.bf16.gmra.mrb[0].mxu0 %v517
        %v654 = vpop.f32.mrb[0].mxu0
        %v655 = vadd.f32 0.0, %v654
        %v656 = vpop.f32.mrb[0].mxu0
        %v657 = vadd.f32 0.0, %v656
        %v658 = vpop.f32.mrb[0].mxu0
        %v659 = vadd.f32 0.0, %v658
        %v660 = vpop.f32.mrb[0].mxu0
        %v661 = vadd.f32 0.0, %v660
        %662 = vmatprep.mubr.bf16.mxu0 0
        %663 = vmatmul.mubr.bf16.gmra.mrb[0].mxu0 %v520
        %v664 = vpop.f32.mrb[0].mxu0
        %v665 = vadd.f32 0.0, %v664
        %v666 = vpop.f32.mrb[0].mxu0
        %v667 = vadd.f32 0.0, %v666
        %v668 = vpop.f32.mrb[0].mxu0
        %v669 = vadd.f32 0.0, %v668
        %v670 = vpop.f32.mrb[0].mxu0
        %v671 = vadd.f32 0.0, %v670
        %672 = vmatprep.mubr.bf16.mxu0 0
        %673 = vmatmul.mubr.bf16.gmra.mrb[0].mxu0 %v523
        %v674 = vpop.f32.mrb[0].mxu0
        %v675 = vadd.f32 0.0, %v674
        %v676 = vpop.f32.mrb[0].mxu0
        %v677 = vadd.f32 0.0, %v676
        %v678 = vpop.f32.mrb[0].mxu0
        %v679 = vadd.f32 0.0, %v678
        %v680 = vpop.f32.mrb[0].mxu0
        %v681 = vadd.f32 0.0, %v680
        %682 = vmatprep.mubr.bf16.mxu0 0
        %683 = vmatmul.mubr.bf16.gmra.mrb[0].mxu0 %v526
        %v684 = vpop.f32.mrb[0].mxu0
        %v685 = vadd.f32 0.0, %v684
        %v686 = vpop.f32.mrb[0].mxu0
        %v687 = vadd.f32 0.0, %v686
        %v688 = vpop.f32.mrb[0].mxu0
        %v689 = vadd.f32 0.0, %v688
        %v690 = vpop.f32.mrb[0].mxu0
        %v691 = vadd.f32 0.0, %v690
        %692 = vmatprep.mubr.bf16.mxu0 0
        %693 = vmatmul.mubr.bf16.gmra.mrb[0].mxu0 %v529
        %v694 = vpop.f32.mrb[0].mxu0
        %v695 = vadd.f32 0.0, %v694
        %v696 = vpop.f32.mrb[0].mxu0
        %v697 = vadd.f32 0.0, %v696
        %v698 = vpop.f32.mrb[0].mxu0
        %v699 = vadd.f32 0.0, %v698
        %v700 = vpop.f32.mrb[0].mxu0
        %v701 = vadd.f32 0.0, %v700
        %702 = vmatprep.mubr.bf16.mxu0 0
        %703 = vmatmul.mubr.bf16.gmra.mrb[0].mxu0 %v532
        %v704 = vpop.f32.mrb[0].mxu0
        %v705 = vadd.f32 0.0, %v704
        %v706 = vpop.f32.mrb[0].mxu0
        %v707 = vadd.f32 0.0, %v706
        %v708 = vpop.f32.mrb[0].mxu0
        %v709 = vadd.f32 0.0, %v708
        %v710 = vpop.f32.mrb[0].mxu0
        %v711 = vadd.f32 0.0, %v710
        %712 = vmatprep.mubr.bf16.mxu0 0
        %713 = vmatmul.mubr.bf16.gmra.mrb[0].mxu0 %v535
        %v714 = vpop.f32.mrb[0].mxu0
        %v715 = vadd.f32 0.0, %v714
        %v716 = vpop.f32.mrb[0].mxu0
        %v717 = vadd.f32 0.0, %v716
        %v718 = vpop.f32.mrb[0].mxu0
        %v719 = vadd.f32 0.0, %v718
        %v720 = vpop.f32.mrb[0].mxu0
        %v721 = vadd.f32 0.0, %v720
        %722 = vmatprep.mubr.bf16.mxu0 0
        %723 = vmatmul.mubr.bf16.gmra.mrb[0].mxu0 %v538
        %v724 = vpop.f32.mrb[0].mxu0
        %v725 = vadd.f32 0.0, %v724
        %v726 = vpop.f32.mrb[0].mxu0
        %v727 = vadd.f32 0.0, %v726
        %v728 = vpop.f32.mrb[0].mxu0
        %v729 = vadd.f32 0.0, %v728
        %v730 = vpop.f32.mrb[0].mxu0
        %v731 = vadd.f32 0.0, %v730
        %732 = vdwg.mxu0
        %v765 = vunpack.c.l.b16 %v343
        %v766 = vunpack.c.l.b16 %v344
        %v767 = vunpack.c.l.b16 %v345
        %v768 = vunpack.c.l.b16 %v346
        %v769 = vunpack.c.l.b16 %v347
        %v770 = vunpack.c.l.b16 %v348
        %v771 = vunpack.c.l.b16 %v349
        %v772 = vunpack.c.l.b16 %v350
        %v773 = vunpack.c.l.b16 %v351
        %v774 = vunpack.c.l.b16 %v352
        %v775 = vunpack.c.l.b16 %v353
        %v776 = vunpack.c.l.b16 %v354
        %v777 = vunpack.c.l.b16 %v355
        %v778 = vunpack.c.l.b16 %v356
        %v779 = vunpack.c.l.b16 %v357
        %v780 = vunpack.c.l.b16 %v358
        %v781 = vunpack.c.l.b16 %v359
        %v782 = vunpack.c.l.b16 %v360
        %v783 = vunpack.c.l.b16 %v361
        %v784 = vunpack.c.l.b16 %v362
        %v785 = vunpack.c.l.b16 %v363
        %v786 = vunpack.c.l.b16 %v364
        %v787 = vunpack.c.l.b16 %v365
        %v788 = vunpack.c.l.b16 %v366
        %v789 = vunpack.c.l.b16 %v367
        %v790 = vunpack.c.l.b16 %v368
        %v791 = vunpack.c.l.b16 %v369
        %v792 = vunpack.c.l.b16 %v370
        %v793 = vunpack.c.l.b16 %v371
        %v794 = vunpack.c.l.b16 %v372
        %v795 = vunpack.c.l.b16 %v373
        %v796 = vunpack.c.l.b16 %v374
        %v797 = vpack.c.b16 %v766, %v765
        %v798 = vpack.c.b16 %v768, %v767
        %v799 = vpack.c.b16 %v770, %v769
        %v800 = vpack.c.b16 %v772, %v771
        %v801 = vpack.c.b16 %v774, %v773
        %v802 = vpack.c.b16 %v776, %v775
        %v803 = vpack.c.b16 %v778, %v777
        %v804 = vpack.c.b16 %v780, %v779
        %v805 = vpack.c.b16 %v782, %v781
        %v806 = vpack.c.b16 %v784, %v783
        %v807 = vpack.c.b16 %v786, %v785
        %v808 = vpack.c.b16 %v788, %v787
        %v809 = vpack.c.b16 %v790, %v789
        %v810 = vpack.c.b16 %v792, %v791
        %v811 = vpack.c.b16 %v794, %v793
        %v812 = vpack.c.b16 %v796, %v795
        %v814 = vsel %vm491, %v797, 0
        %v817 = vsel %vm491, %v798, 0
        %v820 = vsel %vm491, %v799, 0
        %v823 = vsel %vm491, %v800, 0
        %v826 = vsel %vm491, %v801, 0
        %v829 = vsel %vm491, %v802, 0
        %v832 = vsel %vm491, %v803, 0
        %v835 = vsel %vm491, %v804, 0
        %v838 = vsel %vm491, %v805, 0
        %v841 = vsel %vm491, %v806, 0
        %v844 = vsel %vm491, %v807, 0
        %v847 = vsel %vm491, %v808, 0
        %v850 = vsel %vm491, %v809, 0
        %v853 = vsel %vm491, %v810, 0
        %v856 = vsel %vm491, %v811, 0
        %v859 = vsel %vm491, %v812, 0
        %861 = vmatprep.subr.bf16.mxu0 %v480
        %862 = vmatpush1.bf16.msra.mxu0 %v479
        %863 = vmatprep.subr.bf16.mxu0 %v482
        %864 = vmatpush1.bf16.msra.mxu0 %v481
        %865 = vmatprep.subr.bf16.mxu0 %v484
        %866 = vmatpush1.bf16.msra.mxu0 %v483
        %867 = vmatprep.subr.bf16.mxu0 0
        %868 = vmatpush1.bf16.msra.mxu0 0
        %869 = vmatprep.subr.bf16.mxu0 0
        %870 = vmatpush1.bf16.msra.mxu0 0
        %871 = vmatprep.subr.bf16.mxu0 0
        %872 = vmatpush1.bf16.msra.mxu0 0
        %873 = vmatprep.subr.bf16.mxu0 0
        %874 = vmatpush1.bf16.msra.mxu0 0
        %875 = vmatprep.subr.bf16.mxu0 0
        %876 = vmatpush1.bf16.msra.mxu0 0
        %877 = vmatprep.subr.bf16.mxu0 0
        %878 = vmatpush1.bf16.msra.mxu0 0
        %879 = vmatprep.subr.bf16.mxu0 0
        %880 = vmatpush1.bf16.msra.mxu0 0
        %881 = vmatprep.subr.bf16.mxu0 0
        %882 = vmatpush1.bf16.msra.mxu0 0
        %883 = vmatprep.subr.bf16.mxu0 0
        %884 = vmatpush1.bf16.msra.mxu0 0
        %885 = vmatprep.subr.bf16.mxu0 0
        %886 = vmatpush1.bf16.msra.mxu0 0
        %887 = vmatprep.subr.bf16.mxu0 0
        %888 = vmatpush1.bf16.msra.mxu0 0
        %889 = vmatprep.subr.bf16.mxu0 0
        %890 = vmatpush1.bf16.msra.mxu0 0
        %891 = vmatprep.subr.bf16.mxu0 0
        %892 = vmatpush1.bf16.msra.mxu0 0
        %893 = vmatprep.mubr.bf16.mxu0 0
        %894 = vmatmul.mubr.bf16.gmra.mrb[0].mxu0 %v814
        %v895 = vpop.f32.mrb[0].mxu0
        %v896 = vadd.f32 0.0, %v895
        %v897 = vpop.f32.mrb[0].mxu0
        %v898 = vadd.f32 0.0, %v897
        %v899 = vpop.f32.mrb[0].mxu0
        %v900 = vadd.f32 0.0, %v899
        %v901 = vpop.f32.mrb[0].mxu0
        %v902 = vadd.f32 0.0, %v901
        %903 = vmatprep.mubr.bf16.mxu0 0
        %904 = vmatmul.mubr.bf16.gmra.mrb[0].mxu0 %v817
        %v905 = vpop.f32.mrb[0].mxu0
        %v906 = vadd.f32 0.0, %v905
        %v907 = vpop.f32.mrb[0].mxu0
        %v908 = vadd.f32 0.0, %v907
        %v909 = vpop.f32.mrb[0].mxu0
        %v910 = vadd.f32 0.0, %v909
        %v911 = vpop.f32.mrb[0].mxu0
        %v912 = vadd.f32 0.0, %v911
        %913 = vmatprep.mubr.bf16.mxu0 0
        %914 = vmatmul.mubr.bf16.gmra.mrb[0].mxu0 %v820
        %v915 = vpop.f32.mrb[0].mxu0
        %v916 = vadd.f32 0.0, %v915
        %v917 = vpop.f32.mrb[0].mxu0
        %v918 = vadd.f32 0.0, %v917
        %v919 = vpop.f32.mrb[0].mxu0
        %v920 = vadd.f32 0.0, %v919
        %v921 = vpop.f32.mrb[0].mxu0
        %v922 = vadd.f32 0.0, %v921
        %923 = vmatprep.mubr.bf16.mxu0 0
        %924 = vmatmul.mubr.bf16.gmra.mrb[0].mxu0 %v823
        %v925 = vpop.f32.mrb[0].mxu0
        %v926 = vadd.f32 0.0, %v925
        %v927 = vpop.f32.mrb[0].mxu0
        %v928 = vadd.f32 0.0, %v927
        %v929 = vpop.f32.mrb[0].mxu0
        %v930 = vadd.f32 0.0, %v929
        %v931 = vpop.f32.mrb[0].mxu0
        %v932 = vadd.f32 0.0, %v931
        %933 = vmatprep.mubr.bf16.mxu0 0
        %934 = vmatmul.mubr.bf16.gmra.mrb[0].mxu0 %v826
        %v935 = vpop.f32.mrb[0].mxu0
        %v936 = vadd.f32 0.0, %v935
        %v937 = vpop.f32.mrb[0].mxu0
        %v938 = vadd.f32 0.0, %v937
        %v939 = vpop.f32.mrb[0].mxu0
        %v940 = vadd.f32 0.0, %v939
        %v941 = vpop.f32.mrb[0].mxu0
        %v942 = vadd.f32 0.0, %v941
        %943 = vmatprep.mubr.bf16.mxu0 0
        %944 = vmatmul.mubr.bf16.gmra.mrb[0].mxu0 %v829
        %v945 = vpop.f32.mrb[0].mxu0
        %v946 = vadd.f32 0.0, %v945
        %v947 = vpop.f32.mrb[0].mxu0
        %v948 = vadd.f32 0.0, %v947
        %v949 = vpop.f32.mrb[0].mxu0
        %v950 = vadd.f32 0.0, %v949
        %v951 = vpop.f32.mrb[0].mxu0
        %v952 = vadd.f32 0.0, %v951
        %953 = vmatprep.mubr.bf16.mxu0 0
        %954 = vmatmul.mubr.bf16.gmra.mrb[0].mxu0 %v832
        %v955 = vpop.f32.mrb[0].mxu0
        %v956 = vadd.f32 0.0, %v955
        %v957 = vpop.f32.mrb[0].mxu0
        %v958 = vadd.f32 0.0, %v957
        %v959 = vpop.f32.mrb[0].mxu0
        %v960 = vadd.f32 0.0, %v959
        %v961 = vpop.f32.mrb[0].mxu0
        %v962 = vadd.f32 0.0, %v961
        %963 = vmatprep.mubr.bf16.mxu0 0
        %964 = vmatmul.mubr.bf16.gmra.mrb[0].mxu0 %v835
        %v965 = vpop.f32.mrb[0].mxu0
        %v966 = vadd.f32 0.0, %v965
        %v967 = vpop.f32.mrb[0].mxu0
        %v968 = vadd.f32 0.0, %v967
        %v969 = vpop.f32.mrb[0].mxu0
        %v970 = vadd.f32 0.0, %v969
        %v971 = vpop.f32.mrb[0].mxu0
        %v972 = vadd.f32 0.0, %v971
        %973 = vmatprep.mubr.bf16.mxu0 0
        %974 = vmatmul.mubr.bf16.gmra.mrb[0].mxu0 %v838
        %v975 = vpop.f32.mrb[0].mxu0
        %v976 = vadd.f32 0.0, %v975
        %v977 = vpop.f32.mrb[0].mxu0
        %v978 = vadd.f32 0.0, %v977
        %v979 = vpop.f32.mrb[0].mxu0
        %v980 = vadd.f32 0.0, %v979
        %v981 = vpop.f32.mrb[0].mxu0
        %v982 = vadd.f32 0.0, %v981
        %983 = vmatprep.mubr.bf16.mxu0 0
        %984 = vmatmul.mubr.bf16.gmra.mrb[0].mxu0 %v841
        %v985 = vpop.f32.mrb[0].mxu0
        %v986 = vadd.f32 0.0, %v985
        %v987 = vpop.f32.mrb[0].mxu0
        %v988 = vadd.f32 0.0, %v987
        %v989 = vpop.f32.mrb[0].mxu0
        %v990 = vadd.f32 0.0, %v989
        %v991 = vpop.f32.mrb[0].mxu0
        %v992 = vadd.f32 0.0, %v991
        %993 = vmatprep.mubr.bf16.mxu0 0
        %994 = vmatmul.mubr.bf16.gmra.mrb[0].mxu0 %v844
        %v995 = vpop.f32.mrb[0].mxu0
        %v996 = vadd.f32 0.0, %v995
        %v997 = vpop.f32.mrb[0].mxu0
        %v998 = vadd.f32 0.0, %v997
        %v999 = vpop.f32.mrb[0].mxu0
        %v1000 = vadd.f32 0.0, %v999
        %v1001 = vpop.f32.mrb[0].mxu0
        %v1002 = vadd.f32 0.0, %v1001
        %1003 = vmatprep.mubr.bf16.mxu0 0
        %1004 = vmatmul.mubr.bf16.gmra.mrb[0].mxu0 %v847
        %v1005 = vpop.f32.mrb[0].mxu0
        %v1006 = vadd.f32 0.0, %v1005
        %v1007 = vpop.f32.mrb[0].mxu0
        %v1008 = vadd.f32 0.0, %v1007
        %v1009 = vpop.f32.mrb[0].mxu0
        %v1010 = vadd.f32 0.0, %v1009
        %v1011 = vpop.f32.mrb[0].mxu0
        %v1012 = vadd.f32 0.0, %v1011
        %1013 = vmatprep.mubr.bf16.mxu0 0
        %1014 = vmatmul.mubr.bf16.gmra.mrb[0].mxu0 %v850
        %v1015 = vpop.f32.mrb[0].mxu0
        %v1016 = vadd.f32 0.0, %v1015
        %v1017 = vpop.f32.mrb[0].mxu0
        %v1018 = vadd.f32 0.0, %v1017
        %v1019 = vpop.f32.mrb[0].mxu0
        %v1020 = vadd.f32 0.0, %v1019
        %v1021 = vpop.f32.mrb[0].mxu0
        %v1022 = vadd.f32 0.0, %v1021
        %1023 = vmatprep.mubr.bf16.mxu0 0
        %1024 = vmatmul.mubr.bf16.gmra.mrb[0].mxu0 %v853
        %v1025 = vpop.f32.mrb[0].mxu0
        %v1026 = vadd.f32 0.0, %v1025
        %v1027 = vpop.f32.mrb[0].mxu0
        %v1028 = vadd.f32 0.0, %v1027
        %v1029 = vpop.f32.mrb[0].mxu0
        %v1030 = vadd.f32 0.0, %v1029
        %v1031 = vpop.f32.mrb[0].mxu0
        %v1032 = vadd.f32 0.0, %v1031
        %1033 = vmatprep.mubr.bf16.mxu0 0
        %1034 = vmatmul.mubr.bf16.gmra.mrb[0].mxu0 %v856
        %v1035 = vpop.f32.mrb[0].mxu0
        %v1036 = vadd.f32 0.0, %v1035
        %v1037 = vpop.f32.mrb[0].mxu0
        %v1038 = vadd.f32 0.0, %v1037
        %v1039 = vpop.f32.mrb[0].mxu0
        %v1040 = vadd.f32 0.0, %v1039
        %v1041 = vpop.f32.mrb[0].mxu0
        %v1042 = vadd.f32 0.0, %v1041
        %1043 = vmatprep.mubr.bf16.mxu0 0
        %1044 = vmatmul.mubr.bf16.gmra.mrb[0].mxu0 %v859
        %v1045 = vpop.f32.mrb[0].mxu0
        %v1046 = vadd.f32 0.0, %v1045
        %v1047 = vpop.f32.mrb[0].mxu0
        %v1048 = vadd.f32 0.0, %v1047
        %v1049 = vpop.f32.mrb[0].mxu0
        %v1050 = vadd.f32 0.0, %v1049
        %v1051 = vpop.f32.mrb[0].mxu0
        %v1052 = vadd.f32 0.0, %v1051
        %1053 = vdwg.mxu0
        %v1054 = vld [vmem:[%s307] sm:$0x1]
        %v1055 = vsub.f32 %v575, %v898
        %v1056 = vsub.f32 %v579, %v902
        %v1057 = vsub.f32 %v585, %v908
        %v1058 = vsub.f32 %v589, %v912
        %v1059 = vsub.f32 %v595, %v918
        %v1060 = vsub.f32 %v599, %v922
        %v1061 = vsub.f32 %v605, %v928
        %v1062 = vsub.f32 %v609, %v932
        %v1063 = vsub.f32 %v615, %v938
        %v1064 = vsub.f32 %v619, %v942
        %v1065 = vsub.f32 %v625, %v948
        %v1066 = vsub.f32 %v629, %v952
        %v1067 = vsub.f32 %v635, %v958
        %v1068 = vsub.f32 %v639, %v962
        %v1069 = vsub.f32 %v645, %v968
        %v1070 = vsub.f32 %v649, %v972
        %v1071 = vsub.f32 %v655, %v978
        %v1072 = vsub.f32 %v659, %v982
        %v1073 = vsub.f32 %v665, %v988
        %v1074 = vsub.f32 %v669, %v992
        %v1075 = vsub.f32 %v675, %v998
        %v1076 = vsub.f32 %v679, %v1002
        %v1077 = vsub.f32 %v685, %v1008
        %v1078 = vsub.f32 %v689, %v1012
        %v1079 = vsub.f32 %v695, %v1018
        %v1080 = vsub.f32 %v699, %v1022
        %v1081 = vsub.f32 %v705, %v1028
        %v1082 = vsub.f32 %v709, %v1032
        %v1083 = vsub.f32 %v715, %v1038
        %v1084 = vsub.f32 %v719, %v1042
        %v1085 = vsub.f32 %v725, %v1048
        %v1086 = vsub.f32 %v729, %v1052
        %v1088 = vlaneseq
        %v1089 = vshrl.u32 %v1088, 7
        %v1090 = vsub.s32 0, %v1089
        %v1091 = vrot.slane %v1054, %v1090
        %v1093 = vadd.f32 %v1055, %v1091
        %v1094 = vadd.f32 %v1056, %v1091
        %v1095 = vadd.f32 %v1057, %v1091
        %v1096 = vadd.f32 %v1058, %v1091
        %v1097 = vadd.f32 %v1059, %v1091
        %v1098 = vadd.f32 %v1060, %v1091
        %v1099 = vadd.f32 %v1061, %v1091
        %v1100 = vadd.f32 %v1062, %v1091
        %v1101 = vadd.f32 %v1063, %v1091
        %v1102 = vadd.f32 %v1064, %v1091
        %v1103 = vadd.f32 %v1065, %v1091
        %v1104 = vadd.f32 %v1066, %v1091
        %v1105 = vadd.f32 %v1067, %v1091
        %v1106 = vadd.f32 %v1068, %v1091
        %v1107 = vadd.f32 %v1069, %v1091
        %v1108 = vadd.f32 %v1070, %v1091
        %v1109 = vadd.f32 %v1071, %v1091
        %v1110 = vadd.f32 %v1072, %v1091
        %v1111 = vadd.f32 %v1073, %v1091
        %v1112 = vadd.f32 %v1074, %v1091
        %v1113 = vadd.f32 %v1075, %v1091
        %v1114 = vadd.f32 %v1076, %v1091
        %v1115 = vadd.f32 %v1077, %v1091
        %v1116 = vadd.f32 %v1078, %v1091
        %v1117 = vadd.f32 %v1079, %v1091
        %v1118 = vadd.f32 %v1080, %v1091
        %v1119 = vadd.f32 %v1081, %v1091
        %v1120 = vadd.f32 %v1082, %v1091
        %v1121 = vadd.f32 %v1083, %v1091
        %v1122 = vadd.f32 %v1084, %v1091
        %v1123 = vadd.f32 %v1085, %v1091
        %v1124 = vadd.f32 %v1086, %v1091
        %1125 = vst [vmem:[%s280] sm:$0xff] %v1093
        %1126 = vst [vmem:[%s280 + $0x8] sm:$0xff] %v1094
        %1127 = vst [vmem:[%s280 + $0x10] sm:$0xff] %v1095
        %1128 = vst [vmem:[%s280 + $0x18] sm:$0xff] %v1096
        %1129 = vst [vmem:[%s280 + $0x20] sm:$0xff] %v1097
        %1130 = vst [vmem:[%s280 + $0x28] sm:$0xff] %v1098
        %1131 = vst [vmem:[%s280 + $0x30] sm:$0xff] %v1099
        %1132 = vst [vmem:[%s280 + $0x38] sm:$0xff] %v1100
        %1133 = vst [vmem:[%s280 + $0x40] sm:$0xff] %v1101
        %1134 = vst [vmem:[%s280 + $0x48] sm:$0xff] %v1102
        %1135 = vst [vmem:[%s280 + $0x50] sm:$0xff] %v1103
        %1136 = vst [vmem:[%s280 + $0x58] sm:$0xff] %v1104
        %1137 = vst [vmem:[%s280 + $0x60] sm:$0xff] %v1105
        %1138 = vst [vmem:[%s280 + $0x68] sm:$0xff] %v1106
        %1139 = vst [vmem:[%s280 + $0x70] sm:$0xff] %v1107
        %1140 = vst [vmem:[%s280 + $0x78] sm:$0xff] %v1108
        %1141 = vst [vmem:[%s280 + $0x80] sm:$0xff] %v1109
        %1142 = vst [vmem:[%s280 + $0x88] sm:$0xff] %v1110
        %1143 = vst [vmem:[%s280 + $0x90] sm:$0xff] %v1111
        %1144 = vst [vmem:[%s280 + $0x98] sm:$0xff] %v1112
        %1145 = vst [vmem:[%s280 + $0xa0] sm:$0xff] %v1113
        %1146 = vst [vmem:[%s280 + $0xa8] sm:$0xff] %v1114
        %1147 = vst [vmem:[%s280 + $0xb0] sm:$0xff] %v1115
        %1148 = vst [vmem:[%s280 + $0xb8] sm:$0xff] %v1116
        %1149 = vst [vmem:[%s280 + $0xc0] sm:$0xff] %v1117
        %1150 = vst [vmem:[%s280 + $0xc8] sm:$0xff] %v1118
        %1151 = vst [vmem:[%s280 + $0xd0] sm:$0xff] %v1119
        %1152 = vst [vmem:[%s280 + $0xd8] sm:$0xff] %v1120
        %1153 = vst [vmem:[%s280 + $0xe0] sm:$0xff] %v1121
        %1154 = vst [vmem:[%s280 + $0xe8] sm:$0xff] %v1122
        %1155 = vst [vmem:[%s280 + $0xf0] sm:$0xff] %v1123
        %1156 = vst [vmem:[%s280 + $0xf8] sm:$0xff] %v1124
        %v1157 = vadd.f32 %v577, %v896
        %v1158 = vadd.f32 %v581, %v900
        %v1159 = vadd.f32 %v587, %v906
        %v1160 = vadd.f32 %v591, %v910
        %v1161 = vadd.f32 %v597, %v916
        %v1162 = vadd.f32 %v601, %v920
        %v1163 = vadd.f32 %v607, %v926
        %v1164 = vadd.f32 %v611, %v930
        %v1165 = vadd.f32 %v617, %v936
        %v1166 = vadd.f32 %v621, %v940
        %v1167 = vadd.f32 %v627, %v946
        %v1168 = vadd.f32 %v631, %v950
        %v1169 = vadd.f32 %v637, %v956
        %v1170 = vadd.f32 %v641, %v960
        %v1171 = vadd.f32 %v647, %v966
        %v1172 = vadd.f32 %v651, %v970
        %v1173 = vadd.f32 %v657, %v976
        %v1174 = vadd.f32 %v661, %v980
        %v1175 = vadd.f32 %v667, %v986
        %v1176 = vadd.f32 %v671, %v990
        %v1177 = vadd.f32 %v677, %v996
        %v1178 = vadd.f32 %v681, %v1000
        %v1179 = vadd.f32 %v687, %v1006
        %v1180 = vadd.f32 %v691, %v1010
        %v1181 = vadd.f32 %v697, %v1016
        %v1182 = vadd.f32 %v701, %v1020
        %v1183 = vadd.f32 %v707, %v1026
        %v1184 = vadd.f32 %v711, %v1030
        %v1185 = vadd.f32 %v717, %v1036
        %v1186 = vadd.f32 %v721, %v1040
        %v1187 = vadd.f32 %v727, %v1046
        %v1188 = vadd.f32 %v731, %v1050
        %1189 = vst [vmem:[%s287] sm:$0xff] %v1157
        %1190 = vst [vmem:[%s287 + $0x8] sm:$0xff] %v1158
        %1191 = vst [vmem:[%s287 + $0x10] sm:$0xff] %v1159
        %1192 = vst [vmem:[%s287 + $0x18] sm:$0xff] %v1160
        %1193 = vst [vmem:[%s287 + $0x20] sm:$0xff] %v1161
        %1194 = vst [vmem:[%s287 + $0x28] sm:$0xff] %v1162
        %1195 = vst [vmem:[%s287 + $0x30] sm:$0xff] %v1163
        %1196 = vst [vmem:[%s287 + $0x38] sm:$0xff] %v1164
        %1197 = vst [vmem:[%s287 + $0x40] sm:$0xff] %v1165
        %1198 = vst [vmem:[%s287 + $0x48] sm:$0xff] %v1166
        %1199 = vst [vmem:[%s287 + $0x50] sm:$0xff] %v1167
        %1200 = vst [vmem:[%s287 + $0x58] sm:$0xff] %v1168
        %1201 = vst [vmem:[%s287 + $0x60] sm:$0xff] %v1169
        %1202 = vst [vmem:[%s287 + $0x68] sm:$0xff] %v1170
        %1203 = vst [vmem:[%s287 + $0x70] sm:$0xff] %v1171
        %1204 = vst [vmem:[%s287 + $0x78] sm:$0xff] %v1172
        %1205 = vst [vmem:[%s287 + $0x80] sm:$0xff] %v1173
        %1206 = vst [vmem:[%s287 + $0x88] sm:$0xff] %v1174
        %1207 = vst [vmem:[%s287 + $0x90] sm:$0xff] %v1175
        %1208 = vst [vmem:[%s287 + $0x98] sm:$0xff] %v1176
        %1209 = vst [vmem:[%s287 + $0xa0] sm:$0xff] %v1177
        %1210 = vst [vmem:[%s287 + $0xa8] sm:$0xff] %v1178
        %1211 = vst [vmem:[%s287 + $0xb0] sm:$0xff] %v1179
        %1212 = vst [vmem:[%s287 + $0xb8] sm:$0xff] %v1180
        %1213 = vst [vmem:[%s287 + $0xc0] sm:$0xff] %v1181
        %1214 = vst [vmem:[%s287 + $0xc8] sm:$0xff] %v1182
        %1215 = vst [vmem:[%s287 + $0xd0] sm:$0xff] %v1183
        %1216 = vst [vmem:[%s287 + $0xd8] sm:$0xff] %v1184
        %1217 = vst [vmem:[%s287 + $0xe0] sm:$0xff] %v1185
        %1218 = vst [vmem:[%s287 + $0xe8] sm:$0xff] %v1186
        %1219 = vst [vmem:[%s287 + $0xf0] sm:$0xff] %v1187
        %1220 = vst [vmem:[%s287 + $0xf8] sm:$0xff] %v1188
        %s1221 = sand.u32 %s149, 1
        %s1222 = scalar_lea.sflag [#allocation3], %s1221
        %s1223 = sand.u32 %s149, 1
        %s1224 = smul.addr %s1223, 256
        %s1225 = scalar_lea.vmem [#allocation2], %s1224
        %s1226 = sand.u32 %s177, 1
        %s1227 = scalar_lea.sflag [#allocation5], %s1226
        %s1228 = sand.u32 %s177, 1
        %s1229 = smul.addr %s1228, 256
        %s1230 = scalar_lea.vmem [#allocation4], %s1229
        // Predicated region
        $region37: #{tpu_custom_call.1} parent=35 // pred_check
          %p1231 = pneg %p159
        $region38: #{tpu_custom_call.1} parent=35 // pred_check_branch
          %1233 = sbr.rel (%p1231) target = $region40
        $region39: #{tpu_custom_call.1} parent=35 // pred_region
          %s1234 = smul.u32 32, %s27
          %s1236 = ssub.s32 4096, 4096
          %1237 = vsyncadd %s1222, %s1236
          %s1238 = sadd.s32 %s28, %s1234
          %s1239 = smul.addr %s1238, 128
          %s1240 = scalar_lea.hbm %s4, %s1239
          %s1241 = sshll.u32 %s1225, 4
          %s1242 = int_to_ptr.vmem [resolvable:$true] %s1241
          %1247 = dma.vmem_to_hbm [thread:$0]  %s1242, 4096, %s1240, %s1222, 128, 128, 8
        $region40: #{tpu_custom_call.1} parent=35 // pred_fallthru
          _
        // Predicated region
        $region41: #{tpu_custom_call.1} parent=35 // pred_check
          %p1248 = pneg %p187
        $region42: #{tpu_custom_call.1} parent=35 // pred_check_branch
          %1250 = sbr.rel (%p1248) target = $region44
        $region43: #{tpu_custom_call.1} parent=35 // pred_region
          %s1251 = smul.u32 32, %s27
          %s1253 = ssub.s32 4096, 4096
          %1254 = vsyncadd %s1227, %s1253
          %s1255 = sadd.s32 %s28, %s1251
          %s1256 = smul.addr %s1255, 128
          %s1257 = scalar_lea.hbm %s5, %s1256
          %s1258 = sshll.u32 %s1230, 4
          %s1259 = int_to_ptr.vmem [resolvable:$true] %s1258
          %1264 = dma.vmem_to_hbm [thread:$0]  %s1259, 4096, %s1257, %s1227, 128, 128, 8
        $region44: #{tpu_custom_call.1} parent=35 // pred_fallthru
          _
      $region36: #{tpu_custom_call.1} parent=5 // pred_fallthru
        _
      %p1265 = scmp.le.s32.totalorder 2, %s18
      // Predicated region
      $region45: #{tpu_custom_call.1} parent=5 // pred_check
        %p1266 = pneg %p1265
      $region46: #{tpu_custom_call.1} parent=5 // pred_check_branch
        %1268 = sbr.rel (%p1266) target = $region48
      $region47: #{tpu_custom_call.1} parent=5 // pred_region
        %s1269 = ssub.s32 %s18, 2
        // Predicated region
        $region49: #{tpu_custom_call.1} parent=47 // pred_check
          %p1270 = pneg %p165
        $region50: #{tpu_custom_call.1} parent=47 // pred_check_branch
          %1272 = sbr.rel (%p1270) target = $region52
        $region51: #{tpu_custom_call.1} parent=47 // pred_region
          %s1273 = sand.u32 %s150, 1
          %s1274 = scalar_lea.sflag [#allocation3], %s1273
          %s1275 = sand.u32 %s150, 1
          %s1276 = smul.addr %s1275, 256
          %s1277 = scalar_lea.vmem [#allocation2], %s1276
          %1278 = dma.done %s1274, 4096
        $region52: #{tpu_custom_call.1} parent=47 // pred_fallthru
          _
        // Predicated region
        $region53: #{tpu_custom_call.1} parent=47 // pred_check
          %p1279 = pneg %p193
        $region54: #{tpu_custom_call.1} parent=47 // pred_check_branch
          %1281 = sbr.rel (%p1279) target = $region56
        $region55: #{tpu_custom_call.1} parent=47 // pred_region
          %s1282 = sand.u32 %s178, 1
          %s1283 = scalar_lea.sflag [#allocation5], %s1282
          %s1284 = sand.u32 %s178, 1
          %s1285 = smul.addr %s1284, 256
          %s1286 = scalar_lea.vmem [#allocation4], %s1285
          %1287 = dma.done %s1283, 4096
        $region56: #{tpu_custom_call.1} parent=47 // pred_fallthru
          _
      $region48: #{tpu_custom_call.1} parent=5 // pred_fallthru
        _
    $region6: #{tpu_custom_call.1} parent=1 // loop_footer
      %s22 = sadd.s32 1, %s18
    $region7: #{tpu_custom_call.1} parent=1 // loop_footer_branch
      %17 = sbr.rel target = $region3
    $region8: #{tpu_custom_call.1} parent=1 // loop_exit
      _
    %1288 = vsyncpa [#allocation3], 1
    %s1289 = scalar_lea.sflag [#allocation3], 1
    %1290 = vsyncpa %s1289, 1
    %1291 = vsyncpa [#allocation5], 1
    %s1292 = scalar_lea.sflag [#allocation5], 1
    %1293 = vsyncpa %s1292, 1

</llo_original>
